<compile_context>
chip_gen: v6e
topology: v6e:2x2x1
jax: 0.10.0
libtpu: 0.0.40
codegen_flags: <defaults>
</compile_context>

<pallas_src>
import math
import numpy as np
import jax
import jax.numpy as jnp
from jax.experimental import pallas as pl
from jax.experimental.pallas import tpu as pltpu

LANE = 128
SUBLANE = 8


def _round_up(x, m):
    return ((x + m - 1) // m) * m


# ---------------------------------------------------------------------------
# Pallas kernel: dense matmul on the MXU (f32 accumulate) + bias add on the VPU
# ---------------------------------------------------------------------------
def tt_linear_kernel(x_ref, w_ref, b_ref, o_ref):
    # x_ref: (tm, K_pad)  w_ref: (K_pad, tn)  b_ref: (1, tn)  o_ref: (tm, tn)
    acc = jnp.dot(x_ref[...], w_ref[...], preferred_element_type=jnp.float32)
    o_ref[...] = (acc + b_ref[...].astype(jnp.float32)).astype(o_ref.dtype)


# ---------------------------------------------------------------------------
# TT reconstruction (parameter setup only -- NOT in the per-call forward path)
# cores[i]: (r_{i-1}, d_i, r_i), r_0 = r_{2k} = 1, dims d = [n1..nk, m1..mk]
# ---------------------------------------------------------------------------
def tt_reconstruct_matrix(cores, in_features, out_features):
    res = cores[0][0]  # (d0, r1) -- drop leading rank-1
    for c in cores[1:]:
        res = jnp.tensordot(res, c, axes=((res.ndim - 1,), (0,)))
    res = res[..., 0]  # drop trailing rank-1 -> (n1..nk, m1..mk)
    return res.reshape(in_features, out_features)


def prepare_tt_linear_params(cores, bias, in_features, out_features,
                             *, compute_dtype=jnp.float32):
    """Build the (padded, lane-dense) dense weight ONCE, hoisted out of forward."""
    W = tt_reconstruct_matrix(cores, in_features, out_features)
    K_pad = _round_up(in_features, LANE)
    N_pad = _round_up(out_features, LANE)
    W_pad = jnp.zeros((K_pad, N_pad), dtype=compute_dtype)
    W_pad = W_pad.at[:in_features, :out_features].set(W.astype(compute_dtype))
    b_pad = jnp.zeros((1, N_pad), dtype=jnp.float32)
    b_pad = b_pad.at[0, :out_features].set(bias.astype(jnp.float32))
    return W_pad, b_pad


# ---------------------------------------------------------------------------
# Forward: y = x @ W + bias  (x: (..., in_features) -> (..., out_features))
# ---------------------------------------------------------------------------
def tt_linear_forward(x, W_pad, b_pad, out_features):
    *lead, in_features = x.shape
    K_pad, N_pad = W_pad.shape
    M = int(np.prod(lead)) if lead else 1

    # M tile: feed the MXU full row blocks; 8-aligned fallback for tiny batches.
    if M >= 256:
        tm = 256
    elif M >= 128:
        tm = 128
    else:
        tm = _round_up(M, SUBLANE)
    M_pad = _round_up(M, tm)

    # N tile: largest of {512, 256, 128} dividing N_pad. Keeps output stores
    # lane-dense and streams W column-by-column instead of keeping the full
    # weight VMEM-resident (required to scale on v7x's 64 MiB VMEM).
    tn = next(c for c in (512, 256, 128) if N_pad % c == 0)

    x2 = x.reshape(M, in_features).astype(W_pad.dtype)
    x2 = jnp.pad(x2, ((0, M_pad - M), (0, K_pad - in_features)))

    # Scoped VMEM budget: double-buffered x / W / bias / out tiles + margin.
    itemsize = jnp.dtype(W_pad.dtype).itemsize
    vmem_bytes = 2 * (tm * K_pad * itemsize + K_pad * tn * itemsize
                      + tn * 4 + tm * tn * 4) + (4 << 20)
    vmem_limit = int(min(max(vmem_bytes, 32 << 20), 128 << 20))

    grid = (M_pad // tm, N_pad // tn)

    y2 = pl.pallas_call(
        tt_linear_kernel,
        out_shape=jax.ShapeDtypeStruct((M_pad, N_pad), jnp.float32),
        grid_spec=pltpu.PrefetchScalarGridSpec(
            num_scalar_prefetch=0,
            grid=grid,
            in_specs=[
                pl.BlockSpec((tm, K_pad), lambda i, j: (i, 0)),   # x row tile (reused over j)
                pl.BlockSpec((K_pad, tn), lambda i, j: (0, j)),   # streamed W column tile
                pl.BlockSpec((1, tn), lambda i, j: (0, j)),       # bias tile
            ],
            out_specs=pl.BlockSpec((tm, tn), lambda i, j: (i, j)),
        ),
        compiler_params=pltpu.CompilerParams(
            dimension_semantics=("parallel", "parallel"),
            vmem_limit_bytes=vmem_limit,
        ),
    )(x2, W_pad, b_pad)

    y2 = y2[:M, :out_features]
    return y2.reshape(*lead, out_features)


# ---------------------------------------------------------------------------
# Deterministic synthetic parameters (mirrors module __init__ shapes / init scale)
# ---------------------------------------------------------------------------
def make_tt_params(key, ns, ms, rank):
    dims = list(ns) + list(ms)
    k2 = len(dims)
    ranks = [1] + [rank] * (k2 - 1) + [1]
    in_features = int(np.prod(ns))
    out_features = int(np.prod(ms))

    target_stddev = math.sqrt(1.0 / (in_features + out_features))
    core_std = target_stddev ** (1.0 / k2)

    keys = jax.random.split(key, k2 + 1)
    cores = []
    for i, d in enumerate(dims):
        shape = (ranks[i], d, ranks[i + 1])
        cores.append(core_std * jax.random.normal(keys[i], shape, dtype=jnp.float32))

    stdv = 1.0 / math.sqrt(out_features)
    bias = jax.random.uniform(
        keys[-1], (out_features,), minval=-stdv, maxval=stdv, dtype=jnp.float32
    )
    return cores, bias


if __name__ == "__main__":
    # config.shape = [4, 8, 4, 8] -> in_features = 32, out_features = 32; ranks = 2
    ns, ms, rank = (4, 8), (4, 8), 2
    in_features = int(np.prod(ns))
    out_features = int(np.prod(ms))

    key = jax.random.PRNGKey(0)
    k_x, k_p = jax.random.split(key)

    batch, seq = 2, 8
    x = jax.random.normal(k_x, (batch, seq, in_features), dtype=jnp.float32)
    cores, bias = make_tt_params(k_p, ns, ms, rank)

    # Plain-JAX reference (same semantics: x @ TT-reconstructed W + bias)
    W_ref = tt_reconstruct_matrix(cores, in_features, out_features)
    y_ref = x @ W_ref + bias

    # --- f32 path (exact module semantics) ---
    W_pad, b_pad = prepare_tt_linear_params(
        cores, bias, in_features, out_features, compute_dtype=jnp.float32)
    y = jax.block_until_ready(tt_linear_forward(x, W_pad, b_pad, out_features))
    np.testing.assert_allclose(np.asarray(y), np.asarray(y_ref), rtol=1e-5, atol=1e-5)
    assert y.shape == (batch, seq, out_features)

    # --- bf16-weight fast path (v6e/v7x): half VMEM/HBM traffic, f32 accumulate ---
    W_bf, b_bf = prepare_tt_linear_params(
        cores, bias, in_features, out_features, compute_dtype=jnp.bfloat16)
    y_bf = jax.block_until_ready(tt_linear_forward(x, W_bf, b_bf, out_features))
    np.testing.assert_allclose(np.asarray(y_bf), np.asarray(y_ref), rtol=1e-1, atol=1e-1)

    print("KERNEL_OK")
</pallas_src>

<mosaic_0001>
module attributes {stable_mosaic.version = 11 : i64} {
  func.func @tt_linear_kernel(%arg0: i32, %arg1: i32, %arg2: memref<16x128xf32, #tpu.memory_space<vmem>>, %arg3: memref<128x128xf32, #tpu.memory_space<vmem>>, %arg4: memref<1x128xf32, #tpu.memory_space<vmem>>, %arg5: memref<16x128xf32, #tpu.memory_space<vmem>>) attributes {dimension_semantics = [#tpu.dimension_semantics<parallel>, #tpu.dimension_semantics<parallel>], iteration_bounds = array<i64: 1, 1>, scalar_prefetch = 0 : i64, scratch_operands = 0 : i64, tpu.core_type = #tpu.core_type<tc>, window_params = [{transform_indices = @transform_0, window_bounds = array<i64: 16, 128>}, {transform_indices = @transform_1, window_bounds = array<i64: 128, 128>}, {transform_indices = @transform_2, window_bounds = array<i64: 1, 128>}, {transform_indices = @transform_3, window_bounds = array<i64: 16, 128>}]} {
    %c0 = arith.constant 0 : index
    %c0_0 = arith.constant 0 : index
    %0 = vector.load %arg2[%c0, %c0_0] : memref<16x128xf32, #tpu.memory_space<vmem>>, vector<16x128xf32>
    %c0_1 = arith.constant 0 : index
    %c0_2 = arith.constant 0 : index
    %1 = vector.load %arg3[%c0_1, %c0_2] : memref<128x128xf32, #tpu.memory_space<vmem>>, vector<128x128xf32>
    %cst = arith.constant dense<0.000000e+00> : vector<16x128xf32>
    %2 = tpu.matmul %0, %1, %cst {dimension_numbers = #tpu.dot_dimension_numbers<[1], [0], [0], [1], [0, 0, 1, 1], [], []>} : vector<16x128xf32>, vector<128x128xf32>, vector<16x128xf32> -> vector<16x128xf32>
    %c0_3 = arith.constant 0 : index
    %c0_4 = arith.constant 0 : index
    %3 = vector.load %arg4[%c0_3, %c0_4] : memref<1x128xf32, #tpu.memory_space<vmem>>, vector<1x128xf32>
    %4 = vector.broadcast %3 : vector<1x128xf32> to vector<16x128xf32>
    %5 = arith.addf %2, %4 : vector<16x128xf32>
    %c0_5 = arith.constant 0 : index
    %c0_6 = arith.constant 0 : index
    %6 = vector.load %arg5[%c0_5, %c0_6] : memref<16x128xf32, #tpu.memory_space<vmem>>, vector<16x128xf32>
    tpu.vector_store %arg5[%c0_5, %c0_6], %5 {strides = array<i32>} : memref<16x128xf32, #tpu.memory_space<vmem>>, vector<16x128xf32>,
    return
  }
  func.func @transform_0(%arg0: i32, %arg1: i32) -> (i32, i32) {
    %c0_i32 = arith.constant 0 : i32
    %c0_i32_0 = arith.constant 0 : i32
    return %arg0, %c0_i32 : i32, i32
  }
  func.func @transform_1(%arg0: i32, %arg1: i32) -> (i32, i32) {
    %c0_i32 = arith.constant 0 : i32
    %c0_i32_0 = arith.constant 0 : i32
    return %c0_i32, %arg1 : i32, i32
  }
  func.func @transform_2(%arg0: i32, %arg1: i32) -> (i32, i32) {
    %c0_i32 = arith.constant 0 : i32
    %c0_i32_0 = arith.constant 0 : i32
    return %c0_i32, %arg1 : i32, i32
  }
  func.func @transform_3(%arg0: i32, %arg1: i32) -> (i32, i32) {
    %c0_i32 = arith.constant 0 : i32
    return %arg0, %arg1 : i32, i32
  }
}

</mosaic_0001>

<llo_original>
// kernel: tpu_custom_call.1
$region0: #{tpu_custom_call.1}
  #allocation0 [shape = 'u32[]', space=smem, size = 0x4, offset = 0x4, fixed_abs, tag = 'smem constant byte address 0x4 - core index']
  #allocation1 [shape = 'u32[144,128]{1,0:T(1,128)}', space=vmem, size = 0x12000, scoped, tag = 'internal scratch']
  %s0 = inlined_call_operand.hbm [shape: f32[16,128], index: 0, kind: input, shape index: {}]
  %s1 = inlined_call_operand.hbm [shape: f32[128,128], index: 1, kind: input, shape index: {}]
  %s2 = inlined_call_operand.vmem [shape: f32[1,128], index: 2, kind: input, shape index: {}]
  %s3 = inlined_call_operand.hbm [shape: f32[16,128], index: 3, kind: output, shape index: {}]
  %s4 = sld [smem:[#allocation0]]
  $region30: #{tpu_custom_call.1} parent=0
    _
  %s6 = ssub.s32 1, %s4
  %s7 = scalar_select 0, %s6, %s4
  $region1: #{tpu_custom_call.1} parent=0
    #allocation2 [shape = 'u8[8192]{0}', space=vmem, size = 0x2000, scoped, tag = 'input window, operand 0, single buffered']
    #allocation3 [shape = 's32[1]{0}', space=sflag, size = 0x4, scoped, tag = 'scoped memory for tpu_custom_call.1']
    #allocation4 [shape = 's32[1]{0}', space=sflag, size = 0x4, scoped, tag = 'scoped memory for tpu_custom_call.1']
    #allocation5 [shape = 'u8[65536]{0}', space=vmem, size = 0x10000, scoped, tag = 'input window, operand 1, single buffered']
    #allocation6 [shape = 's32[1]{0}', space=sflag, size = 0x4, scoped, tag = 'scoped memory for tpu_custom_call.1']
    #allocation7 [shape = 'u8[8192]{0}', space=vmem, size = 0x2000, scoped, tag = 'output window, operand 0, single buffered']
    %8 = vsyncpa [#allocation3], 0
    %9 = vsyncpa [#allocation6], 0
    %10 = vsyncpa [#allocation4], 0
    // Predicated region
    $region2: #{tpu_custom_call.1} parent=1 // pred_check
      _
    $region3: #{tpu_custom_call.1} parent=1 // pred_check_branch
      %12 = sbr.rel (0) target = $region5
    $region4: #{tpu_custom_call.1} parent=1 // pred_region
      %s14 = ssub.s32 256, 256
      %15 = vsyncadd [#allocation3], %s14
      %s16 = sshll.u32 [#allocation2], 4
      %s17 = int_to_ptr.vmem [resolvable:$true] %s16
      %22 = dma.hbm_to_vmem [thread:$0]  %s0, 256, %s17, [#allocation3], 128, 128, 8
    $region5: #{tpu_custom_call.1} parent=1 // pred_fallthru
      _
    // Predicated region
    $region6: #{tpu_custom_call.1} parent=1 // pred_check
      _
    $region7: #{tpu_custom_call.1} parent=1 // pred_check_branch
      %24 = sbr.rel (0) target = $region9
    $region8: #{tpu_custom_call.1} parent=1 // pred_region
      %s26 = ssub.s32 2048, 2048
      %27 = vsyncadd [#allocation6], %s26
      %s28 = sshll.u32 [#allocation5], 4
      %s29 = int_to_ptr.vmem [resolvable:$true] %s28
      %34 = dma.hbm_to_vmem [thread:$0]  %s1, 2048, %s29, [#allocation6], 128, 128, 8
    $region9: #{tpu_custom_call.1} parent=1 // pred_fallthru
      _
    // Predicated region
    $region10: #{tpu_custom_call.1} parent=1 // pred_check
      _
    $region11: #{tpu_custom_call.1} parent=1 // pred_check_branch
      %36 = sbr.rel (0) target = $region13
    $region12: #{tpu_custom_call.1} parent=1 // pred_region
      _
    $region13: #{tpu_custom_call.1} parent=1 // pred_fallthru
      _
    // Predicated region
    $region14: #{tpu_custom_call.1} parent=1 // pred_check
      _
    $region15: #{tpu_custom_call.1} parent=1 // pred_check_branch
      %38 = sbr.rel (0) target = $region17
    $region16: #{tpu_custom_call.1} parent=1 // pred_region
      %39 = dma.done [#allocation3], 256
    $region17: #{tpu_custom_call.1} parent=1 // pred_fallthru
      _
    // Predicated region
    $region18: #{tpu_custom_call.1} parent=1 // pred_check
      _
    $region19: #{tpu_custom_call.1} parent=1 // pred_check_branch
      %41 = sbr.rel (0) target = $region21
    $region20: #{tpu_custom_call.1} parent=1 // pred_region
      %42 = dma.done [#allocation6], 2048
    $region21: #{tpu_custom_call.1} parent=1 // pred_fallthru
      _
    %v43 = vld [vmem:[#allocation2] sm:$0xff]
    %v44 = vld [vmem:[#allocation2 + $0x8] sm:$0xff]
    %v45 = vld [vmem:[#allocation5] sm:$0xff]
    %v46 = vld [vmem:[#allocation5 + $0x8] sm:$0xff]
    %v47 = vld [vmem:[#allocation5 + $0x10] sm:$0xff]
    %v48 = vld [vmem:[#allocation5 + $0x18] sm:$0xff]
    %v49 = vld [vmem:[#allocation5 + $0x20] sm:$0xff]
    %v50 = vld [vmem:[#allocation5 + $0x28] sm:$0xff]
    %v51 = vld [vmem:[#allocation5 + $0x30] sm:$0xff]
    %v52 = vld [vmem:[#allocation5 + $0x38] sm:$0xff]
    %v53 = vld [vmem:[#allocation5 + $0x40] sm:$0xff]
    %v54 = vld [vmem:[#allocation5 + $0x48] sm:$0xff]
    %v55 = vld [vmem:[#allocation5 + $0x50] sm:$0xff]
    %v56 = vld [vmem:[#allocation5 + $0x58] sm:$0xff]
    %v57 = vld [vmem:[#allocation5 + $0x60] sm:$0xff]
    %v58 = vld [vmem:[#allocation5 + $0x68] sm:$0xff]
    %v59 = vld [vmem:[#allocation5 + $0x70] sm:$0xff]
    %v60 = vld [vmem:[#allocation5 + $0x78] sm:$0xff]
    %v61 = vld [vmem:[%s2] sm:$0x1]
    %v63 = vlaneseq
    %v64 = vshrl.u32 %v63, 7
    %v65 = vsub.s32 0, %v64
    %v66 = vrot.slane %v61, %v65
    %68 = vmatprep.subr.mxu0 0.0
    %69 = vmatpush1.msra.mxu0 %v60
    %70 = vmatprep.subr.mxu0 0.0
    %71 = vmatpush1.msra.mxu0 %v59
    %72 = vmatprep.subr.mxu0 0.0
    %73 = vmatpush1.msra.mxu0 %v58
    %74 = vmatprep.subr.mxu0 0.0
    %75 = vmatpush1.msra.mxu0 %v57
    %76 = vmatprep.subr.mxu0 0.0
    %77 = vmatpush1.msra.mxu0 %v56
    %78 = vmatprep.subr.mxu0 0.0
    %79 = vmatpush1.msra.mxu0 %v55
    %80 = vmatprep.subr.mxu0 0.0
    %81 = vmatpush1.msra.mxu0 %v54
    %82 = vmatprep.subr.mxu0 0.0
    %83 = vmatpush1.msra.mxu0 %v53
    %84 = vmatprep.subr.mxu0 0.0
    %85 = vmatpush1.msra.mxu0 %v52
    %86 = vmatprep.subr.mxu0 0.0
    %87 = vmatpush1.msra.mxu0 %v51
    %88 = vmatprep.subr.mxu0 0.0
    %89 = vmatpush1.msra.mxu0 %v50
    %90 = vmatprep.subr.mxu0 0.0
    %91 = vmatpush1.msra.mxu0 %v49
    %92 = vmatprep.subr.mxu0 0.0
    %93 = vmatpush1.msra.mxu0 %v48
    %94 = vmatprep.subr.mxu0 0.0
    %95 = vmatpush1.msra.mxu0 %v47
    %96 = vmatprep.subr.mxu0 0.0
    %97 = vmatpush1.msra.mxu0 %v46
    %98 = vmatprep.subr.mxu0 0.0
    %99 = vmatpush1.msra.mxu0 %v45
    %100 = vmatprep.subr.mxu0 0.0
    %101 = vmatpush2.msra.mxu0 0.0
    %102 = vmatprep.subr.mxu0 0.0
    %103 = vmatpush2.msra.mxu0 0.0
    %104 = vmatprep.subr.mxu0 0.0
    %105 = vmatpush2.msra.mxu0 0.0
    %106 = vmatprep.subr.mxu0 0.0
    %107 = vmatpush2.msra.mxu0 0.0
    %108 = vmatprep.subr.mxu0 0.0
    %109 = vmatpush2.msra.mxu0 0.0
    %110 = vmatprep.subr.mxu0 0.0
    %111 = vmatpush2.msra.mxu0 0.0
    %112 = vmatprep.subr.mxu0 0.0
    %113 = vmatpush2.msra.mxu0 0.0
    %114 = vmatprep.subr.mxu0 0.0
    %115 = vmatpush2.msra.mxu0 0.0
    %116 = vmatprep.subr.mxu0 0.0
    %117 = vmatpush2.msra.mxu0 0.0
    %118 = vmatprep.subr.mxu0 0.0
    %119 = vmatpush2.msra.mxu0 0.0
    %120 = vmatprep.subr.mxu0 0.0
    %121 = vmatpush2.msra.mxu0 0.0
    %122 = vmatprep.subr.mxu0 0.0
    %123 = vmatpush2.msra.mxu0 0.0
    %124 = vmatprep.subr.mxu0 0.0
    %125 = vmatpush2.msra.mxu0 0.0
    %126 = vmatprep.subr.mxu0 0.0
    %127 = vmatpush2.msra.mxu0 0.0
    %128 = vmatprep.subr.mxu0 0.0
    %129 = vmatpush2.msra.mxu0 0.0
    %130 = vmatprep.subr.mxu0 0.0
    %131 = vmatpush2.msra.mxu0 0.0
    %132 = vmatprep.mubr.f32.mxu0 0.0
    %133 = vmatmul.mubr.f32.gmra.mxu0 %v43
    %v134 = vpop.f32.mrf.mxu0
    %v135 = vadd.f32 %v66, %v134
    %v136 = vpop.f32.mrf.mxu0
    %137 = vmatprep.mubr.f32.mxu0 0.0
    %138 = vmatmul.mubr.f32.gmra.mxu0 %v44
    %v139 = vpop.f32.mrf.mxu0
    %v140 = vadd.f32 %v66, %v139
    %v141 = vpop.f32.mrf.mxu0
    %142 = vdwg.mxu0
    %143 = vst [vmem:[#allocation7] sm:$0xff] %v135
    %144 = vst [vmem:[#allocation7 + $0x8] sm:$0xff] %v140
    // Predicated region
    $region22: #{tpu_custom_call.1} parent=1 // pred_check
      _
    $region23: #{tpu_custom_call.1} parent=1 // pred_check_branch
      %146 = sbr.rel (0) target = $region25
    $region24: #{tpu_custom_call.1} parent=1 // pred_region
      %s148 = ssub.s32 256, 256
      %149 = vsyncadd [#allocation4], %s148
      %s150 = sshll.u32 [#allocation7], 4
      %s151 = int_to_ptr.vmem [resolvable:$true] %s150
      %156 = dma.vmem_to_hbm [thread:$0]  %s151, 256, %s3, [#allocation4], 128, 128, 8
    $region25: #{tpu_custom_call.1} parent=1 // pred_fallthru
      _
    // Predicated region
    $region26: #{tpu_custom_call.1} parent=1 // pred_check
      _
    $region27: #{tpu_custom_call.1} parent=1 // pred_check_branch
      %158 = sbr.rel (0) target = $region29
    $region28: #{tpu_custom_call.1} parent=1 // pred_region
      %159 = dma.done [#allocation4], 256
    $region29: #{tpu_custom_call.1} parent=1 // pred_fallthru
      _
    %160 = vsyncpa [#allocation3], 1
    %161 = vsyncpa [#allocation6], 1
    %162 = vsyncpa [#allocation4], 1

</llo_original>
